<compile_context>
chip_gen: v7x
topology: tpu7x:2x2x1
jax: 0.10.0
libtpu: 0.0.40
codegen_flags: <defaults>
</compile_context>

<pallas_src>
import math
import functools

import jax
import jax.numpy as jnp
from jax.experimental import pallas as pl
from jax.experimental.pallas import tpu as pltpu


def _round_up(n, m):
    return ((n + m - 1) // m) * m


def _propagation_seq_kernel(
    hidden_size, bridge_size, fpad,
    # inputs
    x_ref, b_ref, h0_ref, c0_ref,
    wx_ref, bx_ref,     # fused x projection: (I, P + 4H) bf16, (1, P + 4H) f32
    whb_ref,            # fused recurrent weight: (P, 4H) bf16 (gate biases folded into bx)
    # outputs
    hy_seq_ref, cy_ref,
    # scratch (persists across grid steps)
    h_st, c_st, hb_st,
):
    H = hidden_size
    Br = bridge_size
    HBr = H + Br
    P = fpad  # lane-aligned boundary between the forget block and the gate block
    t = pl.program_id(0)

    @pl.when(t == 0)
    def _():
        h_st[...] = h0_ref[...].astype(jnp.float32)
        c_st[...] = c0_ref[...].astype(jnp.float32)
        hb_st[...] = jnp.zeros_like(hb_st)   # pad lanes [HBr:P) stay zero forever

    wdt = wx_ref.dtype
    x = x_ref[0].astype(wdt)     # (B, I)  -> bf16 operand for the MXU
    br = b_ref[0]                # (B, Br)

    # One fused bf16 MXU matmul for both x-projections (f32 accumulation):
    #   xproj[:, :P)  -> x2f(x)   (zero-padded up to the lane boundary P)
    #   xproj[:, P:)  -> x2h(x) + folded gate biases
    xproj = jnp.dot(x, wx_ref[...], preferred_element_type=jnp.float32) + bx_ref[...]

    # Persistent padded [hidden | bridge | 0] buffer: refresh only the live lanes.
    hb_st[:, :H] = h_st[...]
    hb_st[:, H:HBr] = br.astype(jnp.float32)

    # Gate the [hidden | bridge] stream; padded lanes are zero so they contribute nothing.
    hb_g = jax.nn.sigmoid(xproj[:, :P]) * hb_st[...]

    # One fused recurrent matmul (h2h stacked over b2h), bf16 MXU, f32 accumulation.
    gates = xproj[:, P:] + jnp.dot(
        hb_g.astype(whb_ref.dtype), whb_ref[...], preferred_element_type=jnp.float32)

    # Gate columns were reordered in prepare_params to [forget | in | out | cell]
    # so a single sigmoid covers the first 3H lanes.
    sig = jax.nn.sigmoid(gates[:, :3 * H])
    forgetgate = sig[:, 0 * H:1 * H]
    ingate = sig[:, 1 * H:2 * H]
    outgate = sig[:, 2 * H:3 * H]
    cellgate = jnp.tanh(gates[:, 3 * H:])

    cy = c_st[...] * forgetgate + ingate * cellgate
    hy = outgate * jnp.tanh(cy)

    h_st[...] = hy
    c_st[...] = cy

    hy_seq_ref[0] = hy.astype(hy_seq_ref.dtype)
    cy_ref[...] = cy.astype(cy_ref.dtype)   # resident block; only final writeback hits HBM


def prepare_params(params, *, input_size, bridge_size, hidden_size,
                   weight_dtype=jnp.bfloat16):
    """One-time weight fusion (do at init / per parameter update, NOT per step)."""
    H, Br, I = hidden_size, bridge_size, input_size
    HBr = H + Br
    P = _round_up(HBr, 128)
    G = 4 * H

    # Reorder gate rows from the PyTorch chunk order [forget, in, cell, out]
    # to [forget, in, out, cell] so the three sigmoid gates are contiguous.
    perm = jnp.concatenate([
        jnp.arange(0, H), jnp.arange(H, 2 * H),
        jnp.arange(3 * H, 4 * H), jnp.arange(2 * H, 3 * H)])

    x2h_w = params["x2h_w"][perm]
    h2h_w = params["h2h_w"][perm]
    b2h_w = params["b2h_w"][perm]
    gate_b = (params["x2h_b"] + params["b2h_b"] + params["h2h_b"])[perm]

    wx = jnp.zeros((I, P + G), jnp.float32)
    wx = wx.at[:, :HBr].set(params["x2f_w"].T)
    wx = wx.at[:, P:].set(x2h_w.T)

    bx = jnp.zeros((1, P + G), jnp.float32)
    bx = bx.at[0, :HBr].set(params["x2f_b"])
    bx = bx.at[0, P:].set(gate_b)

    whb = jnp.zeros((P, G), jnp.float32)
    whb = whb.at[:H, :].set(h2h_w.T)
    whb = whb.at[H:HBr, :].set(b2h_w.T)

    return {"wx": wx.astype(weight_dtype),
            "bx": bx,                       # bias stays f32 (tiny; added post-accumulation)
            "whb": whb.astype(weight_dtype),
            "fpad": P}


def propagation_unit_sequence(x_seq, b_seq, h0, c0, fused, *,
                              hidden_size, bridge_size):
    """Run T PropagationUnitCell steps inside ONE pallas_call with VMEM-resident weights.

    x_seq: (T, B, I), b_seq: (T, B, Br), h0/c0: (B, H).
    Returns (hy_seq (T, B, H), cy_final (B, H)).
    """
    T, B, I = x_seq.shape
    Br = b_seq.shape[-1]
    H = hidden_size
    P = int(fused["fpad"])
    G = 4 * H

    kernel = functools.partial(_propagation_seq_kernel, H, Br, P)

    # VMEM budget sized to the actual operand set (weights resident + pipelined blocks).
    w_item = jnp.dtype(fused["wx"].dtype).itemsize
    weight_bytes = (fused["wx"].size * w_item + fused["whb"].size * w_item
                    + fused["bx"].size * 4)
    block_bytes = 4 * (B * I + B * Br + 4 * B * H)      # activation / output blocks
    scratch_bytes = 4 * (2 * B * H + B * P)
    vmem_limit = min(int(2 * (weight_bytes + 2 * block_bytes + scratch_bytes)) + (8 << 20),
                     100 << 20)

    flops = 2 * T * B * (I * (P + G) + P * G)
    transcendentals = T * B * (P + 4 * H)
    bytes_accessed = int(weight_bytes
                         + x_seq.size * x_seq.dtype.itemsize
                         + b_seq.size * b_seq.dtype.itemsize
                         + (T + 1) * B * H * 4 * 2)

    grid_spec = pltpu.PrefetchScalarGridSpec(
        num_scalar_prefetch=0,
        grid=(T,),
        in_specs=[
            pl.BlockSpec((1, B, I), lambda t: (t, 0, 0)),      # x_t
            pl.BlockSpec((1, B, Br), lambda t: (t, 0, 0)),     # bridge_t
            pl.BlockSpec((B, H), lambda t: (0, 0)),            # h0 (constant)
            pl.BlockSpec((B, H), lambda t: (0, 0)),            # c0 (constant)
            pl.BlockSpec((I, P + G), lambda t: (0, 0)),        # wx  (resident in VMEM)
            pl.BlockSpec((1, P + G), lambda t: (0, 0)),        # bx  (resident in VMEM)
            pl.BlockSpec((P, G), lambda t: (0, 0)),            # whb (resident in VMEM)
        ],
        out_specs=(
            pl.BlockSpec((1, B, H), lambda t: (t, 0, 0)),      # hy per step
            pl.BlockSpec((B, H), lambda t: (0, 0)),            # final cy
        ),
        scratch_shapes=[
            pltpu.VMEM((B, H), jnp.float32),   # h state carried across steps
            pltpu.VMEM((B, H), jnp.float32),   # c state carried across steps
            pltpu.VMEM((B, P), jnp.float32),   # padded [h | bridge | 0] buffer
        ],
    )

    hy_seq, cy = pl.pallas_call(
        kernel,
        grid_spec=grid_spec,
        out_shape=(
            jax.ShapeDtypeStruct((T, B, H), h0.dtype),
            jax.ShapeDtypeStruct((B, H), c0.dtype),
        ),
        compiler_params=pltpu.CompilerParams(
            dimension_semantics=("arbitrary",),   # time axis carries recurrent state
            vmem_limit_bytes=vmem_limit,
        ),
        cost_estimate=pl.CostEstimate(
            flops=flops, transcendentals=transcendentals, bytes_accessed=bytes_accessed),
    )(x_seq, b_seq, h0, c0, fused["wx"], fused["bx"], fused["whb"])
    return hy_seq, cy


def propagation_unit_cell(x, b, hx, cx, fused, *, hidden_size, bridge_size):
    """Single PropagationUnitCell step (matches the PyTorch module forward)."""
    hy_seq, cy = propagation_unit_sequence(
        x[None], b[None], hx, cx, fused,
        hidden_size=hidden_size, bridge_size=bridge_size)
    return hy_seq[0], cy


def _reference_step(x, b, hx, cx, params, hidden_size):
    """Pure-JAX reference mirroring the PyTorch forward exactly (original gate order)."""
    H = hidden_size
    bh_forget = x @ params["x2f_w"].T + params["x2f_b"]
    hxg = jax.nn.sigmoid(bh_forget[:, :H]) * hx
    bg = jax.nn.sigmoid(bh_forget[:, H:]) * b
    gates = (x @ params["x2h_w"].T + params["x2h_b"]
             + hxg @ params["h2h_w"].T + params["h2h_b"]
             + bg @ params["b2h_w"].T + params["b2h_b"])
    forgetgate, ingate, cellgate, outgate = jnp.split(gates, 4, axis=1)
    cy = cx * jax.nn.sigmoid(forgetgate) + jax.nn.sigmoid(ingate) * jnp.tanh(cellgate)
    hy = jax.nn.sigmoid(outgate) * jnp.tanh(cy)
    return hy, cy


def init_params(key, input_size, bridge_size, hidden_size, dtype=jnp.float32):
    """Deterministic init matching reset_parameters: U(-1/sqrt(H), 1/sqrt(H))."""
    std = 1.0 / math.sqrt(hidden_size)
    ks = jax.random.split(key, 8)
    u = lambda k, shape: jax.random.uniform(k, shape, dtype, minval=-std, maxval=std)
    return {
        "x2f_w": u(ks[0], (hidden_size + bridge_size, input_size)),
        "x2f_b": u(ks[1], (hidden_size + bridge_size,)),
        "x2h_w": u(ks[2], (4 * hidden_size, input_size)),
        "x2h_b": u(ks[3], (4 * hidden_size,)),
        "b2h_w": u(ks[4], (4 * hidden_size, bridge_size)),
        "b2h_b": u(ks[5], (4 * hidden_size,)),
        "h2h_w": u(ks[6], (4 * hidden_size, hidden_size)),
        "h2h_b": u(ks[7], (4 * hidden_size,)),
    }


if __name__ == "__main__":
    batch = 8
    input_size = 32
    bridge_size = 16
    hidden_size = 32
    seq_len = 8

    root = jax.random.PRNGKey(0)
    kp, kx, kb, kh, kc = jax.random.split(root, 5)

    params = init_params(kp, input_size, bridge_size, hidden_size)
    x_seq = jax.random.normal(kx, (seq_len, batch, input_size), jnp.float32)
    b_seq = jax.random.normal(kb, (seq_len, batch, bridge_size), jnp.float32)
    h0 = jax.random.normal(kh, (batch, hidden_size), jnp.float32)
    c0 = jax.random.normal(kc, (batch, hidden_size), jnp.float32)

    # One-time weight fusion into bf16 MXU-friendly layout.
    fused = prepare_params(params, input_size=input_size, bridge_size=bridge_size,
                           hidden_size=hidden_size, weight_dtype=jnp.bfloat16)

    # --- single-step cell (the PyTorch module's forward) ---
    hy1, cy1 = propagation_unit_cell(x_seq[0], b_seq[0], h0, c0, fused,
                                     hidden_size=hidden_size, bridge_size=bridge_size)
    jax.block_until_ready((hy1, cy1))
    hy1_ref, cy1_ref = _reference_step(x_seq[0], b_seq[0], h0, c0, params, hidden_size)
    # bf16 weights vs f32 reference -> relaxed tolerance.
    assert jnp.allclose(hy1, hy1_ref, atol=3e-2, rtol=3e-2), "single-step hy mismatch"
    assert jnp.allclose(cy1, cy1_ref, atol=3e-2, rtol=3e-2), "single-step cy mismatch"

    # --- full sequence in ONE pallas_call (weights resident in VMEM across steps) ---
    hy_seq, cy = propagation_unit_sequence(x_seq, b_seq, h0, c0, fused,
                                           hidden_size=hidden_size,
                                           bridge_size=bridge_size)
    jax.block_until_ready((hy_seq, cy))

    h_r, c_r = h0, c0
    hy_ref_list = []
    for t in range(seq_len):
        h_r, c_r = _reference_step(x_seq[t], b_seq[t], h_r, c_r, params, hidden_size)
        hy_ref_list.append(h_r)
    hy_seq_ref = jnp.stack(hy_ref_list)

    assert jnp.allclose(hy_seq, hy_seq_ref, atol=3e-2, rtol=3e-2), "sequence hy mismatch"
    assert jnp.allclose(cy, c_r, atol=3e-2, rtol=3e-2), "sequence cy mismatch"

    print("KERNEL_OK")
</pallas_src>

<mosaic_0001>
module attributes {stable_mosaic.version = 11 : i64} {
  func.func @_propagation_seq_kernel(%arg0: i32, %arg1: memref<1x8x32xf32, #tpu.memory_space<vmem>>, %arg2: memref<1x8x16xf32, #tpu.memory_space<vmem>>, %arg3: memref<8x32xf32, #tpu.memory_space<vmem>>, %arg4: memref<8x32xf32, #tpu.memory_space<vmem>>, %arg5: memref<32x256xbf16, #tpu.memory_space<vmem>>, %arg6: memref<1x256xf32, #tpu.memory_space<vmem>>, %arg7: memref<128x128xbf16, #tpu.memory_space<vmem>>, %arg8: memref<1x8x32xf32, #tpu.memory_space<vmem>>, %arg9: memref<8x32xf32, #tpu.memory_space<vmem>>, %arg10: memref<8x32xf32, #tpu.memory_space<vmem>>, %arg11: memref<8x32xf32, #tpu.memory_space<vmem>>, %arg12: memref<8x128xf32, #tpu.memory_space<vmem>>) attributes {dimension_semantics = [#tpu.dimension_semantics<arbitrary>], iteration_bounds = array<i64: 1>, scalar_prefetch = 0 : i64, scratch_operands = 3 : i64, tpu.core_type = #tpu.core_type<tc>, window_params = [{transform_indices = @transform_0, window_bounds = array<i64: 1, 8, 32>}, {transform_indices = @transform_1, window_bounds = array<i64: 1, 8, 16>}, {pipeline_mode = #tpu.pipeline_mode<synchronous>, transform_indices = @transform_2, window_bounds = array<i64: 8, 32>}, {pipeline_mode = #tpu.pipeline_mode<synchronous>, transform_indices = @transform_3, window_bounds = array<i64: 8, 32>}, {pipeline_mode = #tpu.pipeline_mode<synchronous>, transform_indices = @transform_4, window_bounds = array<i64: 32, 256>}, {pipeline_mode = #tpu.pipeline_mode<synchronous>, transform_indices = @transform_5, window_bounds = array<i64: 1, 256>}, {pipeline_mode = #tpu.pipeline_mode<synchronous>, transform_indices = @transform_6, window_bounds = array<i64: 128, 128>}, {transform_indices = @transform_7, window_bounds = array<i64: 1, 8, 32>}, {pipeline_mode = #tpu.pipeline_mode<synchronous>, transform_indices = @transform_8, window_bounds = array<i64: 8, 32>}]} {
    %c0_i32 = arith.constant 0 : i32
    %0 = arith.cmpi eq, %arg0, %c0_i32 : i32
    %1 = arith.extui %0 : i1 to i32
    %c0_i32_0 = arith.constant 0 : i32
    %2 = arith.cmpi ne, %1, %c0_i32_0 : i32
    scf.if %2 {
      %c0_33 = arith.constant 0 : index
      %c0_34 = arith.constant 0 : index
      %52 = vector.load %arg3[%c0_33, %c0_34] : memref<8x32xf32, #tpu.memory_space<vmem>>, vector<8x32xf32>
      %c0_35 = arith.constant 0 : index
      %c0_36 = arith.constant 0 : index
      %53 = vector.load %arg10[%c0_35, %c0_36] : memref<8x32xf32, #tpu.memory_space<vmem>>, vector<8x32xf32>
      tpu.vector_store %arg10[%c0_35, %c0_36], %52 {strides = array<i32>} : memref<8x32xf32, #tpu.memory_space<vmem>>, vector<8x32xf32>,
      %c0_37 = arith.constant 0 : index
      %c0_38 = arith.constant 0 : index
      %54 = vector.load %arg4[%c0_37, %c0_38] : memref<8x32xf32, #tpu.memory_space<vmem>>, vector<8x32xf32>
      %c0_39 = arith.constant 0 : index
      %c0_40 = arith.constant 0 : index
      %55 = vector.load %arg11[%c0_39, %c0_40] : memref<8x32xf32, #tpu.memory_space<vmem>>, vector<8x32xf32>
      tpu.vector_store %arg11[%c0_39, %c0_40], %54 {strides = array<i32>} : memref<8x32xf32, #tpu.memory_space<vmem>>, vector<8x32xf32>,
      %cst_41 = arith.constant 0.000000e+00 : f32
      %56 = vector.broadcast %cst_41 : f32 to vector<8x128xf32>
      %c0_42 = arith.constant 0 : index
      %c0_43 = arith.constant 0 : index
      %57 = vector.load %arg12[%c0_42, %c0_43] : memref<8x128xf32, #tpu.memory_space<vmem>>, vector<8x128xf32>
      tpu.vector_store %arg12[%c0_42, %c0_43], %56 {strides = array<i32>} : memref<8x128xf32, #tpu.memory_space<vmem>>, vector<8x128xf32>,
    } else {
    }
    %c0 = arith.constant 0 : index
    %c0_1 = arith.constant 0 : index
    %c0_2 = arith.constant 0 : index
    %3 = vector.load %arg1[%c0, %c0_1, %c0_2] : memref<1x8x32xf32, #tpu.memory_space<vmem>>, vector<1x8x32xf32>
    %4 = vector.shape_cast %3 : vector<1x8x32xf32> to vector<8x32xf32>
    %5 = arith.truncf %4 : vector<8x32xf32> to vector<8x32xbf16>
    %c0_3 = arith.constant 0 : index
    %c0_4 = arith.constant 0 : index
    %c0_5 = arith.constant 0 : index
    %6 = vector.load %arg2[%c0_3, %c0_4, %c0_5] : memref<1x8x16xf32, #tpu.memory_space<vmem>>, vector<1x8x16xf32>
    %7 = vector.shape_cast %6 : vector<1x8x16xf32> to vector<8x16xf32>
    %c0_6 = arith.constant 0 : index
    %c0_7 = arith.constant 0 : index
    %8 = vector.load %arg5[%c0_6, %c0_7] : memref<32x256xbf16, #tpu.memory_space<vmem>>, vector<32x256xbf16>
    %cst = arith.constant dense<0.000000e+00> : vector<8x256xf32>
    %9 = tpu.matmul %5, %8, %cst {dimension_numbers = #tpu.dot_dimension_numbers<[1], [0], [0], [1], [0, 0, 1, 1], [], []>} : vector<8x32xbf16>, vector<32x256xbf16>, vector<8x256xf32> -> vector<8x256xf32>
    %c0_8 = arith.constant 0 : index
    %c0_9 = arith.constant 0 : index
    %10 = vector.load %arg6[%c0_8, %c0_9] : memref<1x256xf32, #tpu.memory_space<vmem>>, vector<1x256xf32>
    %11 = vector.broadcast %10 : vector<1x256xf32> to vector<8x256xf32>
    %12 = arith.addf %9, %11 : vector<8x256xf32>
    %c0_10 = arith.constant 0 : index
    %c0_11 = arith.constant 0 : index
    %13 = vector.load %arg10[%c0_10, %c0_11] : memref<8x32xf32, #tpu.memory_space<vmem>>, vector<8x32xf32>
    %c0_12 = arith.constant 0 : index
    %c0_13 = arith.constant 0 : index
    %14 = vector.load %arg12[%c0_12, %c0_13] : memref<8x128xf32, #tpu.memory_space<vmem>>, vector<8x32xf32>
    tpu.vector_store %arg12[%c0_12, %c0_13], %13 {strides = array<i32>} : memref<8x128xf32, #tpu.memory_space<vmem>>, vector<8x32xf32>,
    %c0_14 = arith.constant 0 : index
    %c32 = arith.constant 32 : index
    %15 = vector.load %arg12[%c0_14, %c32] : memref<8x128xf32, #tpu.memory_space<vmem>>, vector<8x16xf32>
    tpu.vector_store %arg12[%c0_14, %c32], %7 {strides = array<i32>} : memref<8x128xf32, #tpu.memory_space<vmem>>, vector<8x16xf32>,
    %16 = vector.extract_strided_slice %12 {offsets = [0, 0], sizes = [8, 128], strides = [1, 1]} : vector<8x256xf32> to vector<8x128xf32>
    %17 = arith.negf %16 : vector<8x128xf32>
    %18 = math.exp %17 : vector<8x128xf32>
    %cst_15 = arith.constant 1.000000e+00 : f32
    %19 = vector.broadcast %cst_15 : f32 to vector<8x128xf32>
    %20 = arith.addf %19, %18 : vector<8x128xf32>
    %21 = arith.divf %19, %20 : vector<8x128xf32>
    %c0_16 = arith.constant 0 : index
    %c0_17 = arith.constant 0 : index
    %22 = vector.load %arg12[%c0_16, %c0_17] : memref<8x128xf32, #tpu.memory_space<vmem>>, vector<8x128xf32>
    %23 = arith.mulf %21, %22 : vector<8x128xf32>
    %24 = vector.extract_strided_slice %12 {offsets = [0, 128], sizes = [8, 128], strides = [1, 1]} : vector<8x256xf32> to vector<8x128xf32>
    %25 = arith.truncf %23 : vector<8x128xf32> to vector<8x128xbf16>
    %c0_18 = arith.constant 0 : index
    %c0_19 = arith.constant 0 : index
    %26 = vector.load %arg7[%c0_18, %c0_19] : memref<128x128xbf16, #tpu.memory_space<vmem>>, vector<128x128xbf16>
    %cst_20 = arith.constant dense<0.000000e+00> : vector<8x128xf32>
    %27 = tpu.matmul %25, %26, %cst_20 {dimension_numbers = #tpu.dot_dimension_numbers<[1], [0], [0], [1], [0, 0, 1, 1], [], []>} : vector<8x128xbf16>, vector<128x128xbf16>, vector<8x128xf32> -> vector<8x128xf32>
    %28 = arith.addf %24, %27 : vector<8x128xf32>
    %29 = vector.extract_strided_slice %28 {offsets = [0, 0], sizes = [8, 96], strides = [1, 1]} : vector<8x128xf32> to vector<8x96xf32>
    %30 = arith.negf %29 : vector<8x96xf32>
    %31 = math.exp %30 : vector<8x96xf32>
    %cst_21 = arith.constant 1.000000e+00 : f32
    %32 = vector.broadcast %cst_21 : f32 to vector<8x96xf32>
    %33 = arith.addf %32, %31 : vector<8x96xf32>
    %34 = arith.divf %32, %33 : vector<8x96xf32>
    %35 = vector.extract_strided_slice %34 {offsets = [0, 0], sizes = [8, 32], strides = [1, 1]} : vector<8x96xf32> to vector<8x32xf32>
    %36 = vector.extract_strided_slice %34 {offsets = [0, 32], sizes = [8, 32], strides = [1, 1]} : vector<8x96xf32> to vector<8x32xf32>
    %37 = vector.extract_strided_slice %34 {offsets = [0, 64], sizes = [8, 32], strides = [1, 1]} : vector<8x96xf32> to vector<8x32xf32>
    %38 = vector.extract_strided_slice %28 {offsets = [0, 96], sizes = [8, 32], strides = [1, 1]} : vector<8x128xf32> to vector<8x32xf32>
    %39 = math.tanh %38 : vector<8x32xf32>
    %c0_22 = arith.constant 0 : index
    %c0_23 = arith.constant 0 : index
    %40 = vector.load %arg11[%c0_22, %c0_23] : memref<8x32xf32, #tpu.memory_space<vmem>>, vector<8x32xf32>
    %41 = arith.mulf %40, %35 : vector<8x32xf32>
    %42 = arith.mulf %36, %39 : vector<8x32xf32>
    %43 = arith.addf %41, %42 : vector<8x32xf32>
    %44 = math.tanh %43 : vector<8x32xf32>
    %45 = arith.mulf %37, %44 : vector<8x32xf32>
    %c0_24 = arith.constant 0 : index
    %c0_25 = arith.constant 0 : index
    %46 = vector.load %arg10[%c0_24, %c0_25] : memref<8x32xf32, #tpu.memory_space<vmem>>, vector<8x32xf32>
    tpu.vector_store %arg10[%c0_24, %c0_25], %45 {strides = array<i32>} : memref<8x32xf32, #tpu.memory_space<vmem>>, vector<8x32xf32>,
    %c0_26 = arith.constant 0 : index
    %c0_27 = arith.constant 0 : index
    %47 = vector.load %arg11[%c0_26, %c0_27] : memref<8x32xf32, #tpu.memory_space<vmem>>, vector<8x32xf32>
    tpu.vector_store %arg11[%c0_26, %c0_27], %43 {strides = array<i32>} : memref<8x32xf32, #tpu.memory_space<vmem>>, vector<8x32xf32>,
    %c0_28 = arith.constant 0 : index
    %c0_29 = arith.constant 0 : index
    %c0_30 = arith.constant 0 : index
    %48 = vector.load %arg8[%c0_28, %c0_29, %c0_30] : memref<1x8x32xf32, #tpu.memory_space<vmem>>, vector<1x8x32xf32>
    %49 = vector.shape_cast %48 : vector<1x8x32xf32> to vector<8x32xf32>
    %50 = vector.shape_cast %45 : vector<8x32xf32> to vector<1x8x32xf32>
    tpu.vector_store %arg8[%c0_28, %c0_29, %c0_30], %50 {strides = array<i32>} : memref<1x8x32xf32, #tpu.memory_space<vmem>>, vector<1x8x32xf32>,
    %c0_31 = arith.constant 0 : index
    %c0_32 = arith.constant 0 : index
    %51 = vector.load %arg9[%c0_31, %c0_32] : memref<8x32xf32, #tpu.memory_space<vmem>>, vector<8x32xf32>
    tpu.vector_store %arg9[%c0_31, %c0_32], %43 {strides = array<i32>} : memref<8x32xf32, #tpu.memory_space<vmem>>, vector<8x32xf32>,
    return
  }
  func.func @transform_0(%arg0: i32) -> (i32, i32, i32) {
    %c0_i32 = arith.constant 0 : i32
    %c0_i32_0 = arith.constant 0 : i32
    %c0_i32_1 = arith.constant 0 : i32
    return %arg0, %c0_i32, %c0_i32_0 : i32, i32, i32
  }
  func.func @transform_1(%arg0: i32) -> (i32, i32, i32) {
    %c0_i32 = arith.constant 0 : i32
    %c0_i32_0 = arith.constant 0 : i32
    %c0_i32_1 = arith.constant 0 : i32
    return %arg0, %c0_i32, %c0_i32_0 : i32, i32, i32
  }
  func.func @transform_2(%arg0: i32) -> (i32, i32) {
    %c0_i32 = arith.constant 0 : i32
    %c0_i32_0 = arith.constant 0 : i32
    %c0_i32_1 = arith.constant 0 : i32
    return %c0_i32, %c0_i32_0 : i32, i32
  }
  func.func @transform_3(%arg0: i32) -> (i32, i32) {
    %c0_i32 = arith.constant 0 : i32
    %c0_i32_0 = arith.constant 0 : i32
    %c0_i32_1 = arith.constant 0 : i32
    return %c0_i32, %c0_i32_0 : i32, i32
  }
  func.func @transform_4(%arg0: i32) -> (i32, i32) {
    %c0_i32 = arith.constant 0 : i32
    %c0_i32_0 = arith.constant 0 : i32
    %c0_i32_1 = arith.constant 0 : i32
    return %c0_i32, %c0_i32_0 : i32, i32
  }
  func.func @transform_5(%arg0: i32) -> (i32, i32) {
    %c0_i32 = arith.constant 0 : i32
    %c0_i32_0 = arith.constant 0 : i32
    %c0_i32_1 = arith.constant 0 : i32
    return %c0_i32, %c0_i32_0 : i32, i32
  }
  func.func @transform_6(%arg0: i32) -> (i32, i32) {
    %c0_i32 = arith.constant 0 : i32
    %c0_i32_0 = arith.constant 0 : i32
    %c0_i32_1 = arith.constant 0 : i32
    return %c0_i32, %c0_i32_0 : i32, i32
  }
  func.func @transform_7(%arg0: i32) -> (i32, i32, i32) {
    %c0_i32 = arith.constant 0 : i32
    %c0_i32_0 = arith.constant 0 : i32
    %c0_i32_1 = arith.constant 0 : i32
    return %arg0, %c0_i32, %c0_i32_0 : i32, i32, i32
  }
  func.func @transform_8(%arg0: i32) -> (i32, i32) {
    %c0_i32 = arith.constant 0 : i32
    %c0_i32_0 = arith.constant 0 : i32
    %c0_i32_1 = arith.constant 0 : i32
    return %c0_i32, %c0_i32_0 : i32, i32
  }
}

</mosaic_0001>

<llo_original>
// kernel: tpu_custom_call.1
$region0: #{tpu_custom_call.1}
  #allocation0 [shape = 'u32[]', space=smem, size = 0x4, offset = 0x4, fixed_abs, tag = 'smem constant byte address 0x4 - core index']
  #allocation1 [shape = 'u32[144,128]{1,0:T(1,128)}', space=vmem, size = 0x12000, scoped, tag = 'internal scratch']
  #allocation2 [shape = 'f32[8,32]{1,0:T(8,128)}', space=vmem, size = 0x1000, scoped, tag = 'scratch operand']
  #allocation3 [shape = 'f32[8,32]{1,0:T(8,128)}', space=vmem, size = 0x1000, scoped, tag = 'scratch operand']
  #allocation4 [shape = 'f32[8,128]{1,0:T(8,128)}', space=vmem, size = 0x1000, scoped, tag = 'scratch operand']
  %s0 = inlined_call_operand.hbm [shape: f32[1,8,32], index: 0, kind: input, shape index: {}]
  %s1 = inlined_call_operand.hbm [shape: f32[1,8,16], index: 1, kind: input, shape index: {}]
  %s2 = inlined_call_operand.hbm [shape: f32[8,32], index: 2, kind: input, shape index: {}]
  %s3 = inlined_call_operand.vmem [shape: f32[8,32], index: 3, kind: input, shape index: {}]
  %s4 = inlined_call_operand.hbm [shape: bf16[32,256], index: 4, kind: input, shape index: {}]
  %s5 = inlined_call_operand.vmem [shape: f32[1,256], index: 5, kind: input, shape index: {}]
  %s6 = inlined_call_operand.hbm [shape: bf16[128,128], index: 6, kind: input, shape index: {}]
  %s7 = inlined_call_operand.hbm [shape: f32[1,8,32], index: 7, kind: output, shape index: {0}]
  %s8 = inlined_call_operand.hbm [shape: f32[8,32], index: 8, kind: output, shape index: {1}]
  %9 = xla_tuple %s7, %s8
  %s10 = sld [smem:[#allocation0]]
  $region70: #{tpu_custom_call.1} parent=0
    _
  %s12 = ssub.s32 1, %s10
  %s13 = scalar_select 0, %s12, %s10
  $region1: #{tpu_custom_call.1} parent=0
    #allocation5 [shape = 'u8[4096]{0}', space=vmem, size = 0x1000, scoped, tag = 'input window, operand 0, single buffered']
    #allocation6 [shape = 's32[1]{0}', space=sflag, size = 0x4, scoped, tag = 'scoped memory for tpu_custom_call.1']
    #allocation7 [shape = 's32[1]{0}', space=sflag, size = 0x4, scoped, tag = 'scoped memory for tpu_custom_call.1']
    #allocation8 [shape = 'u8[4096]{0}', space=vmem, size = 0x1000, scoped, tag = 'input window, operand 1, single buffered']
    #allocation9 [shape = 's32[1]{0}', space=sflag, size = 0x4, scoped, tag = 'scoped memory for tpu_custom_call.1']
    #allocation10 [shape = 'u8[4096]{0}', space=vmem, size = 0x1000, scoped, tag = 'input window, operand 2, single buffered']
    #allocation11 [shape = 'u8[16384]{0}', space=vmem, size = 0x4000, scoped, tag = 'input window, operand 4, single buffered']
    #allocation12 [shape = 's32[1]{0}', space=sflag, size = 0x4, scoped, tag = 'scoped memory for tpu_custom_call.1']
    #allocation13 [shape = 'u8[32768]{0}', space=vmem, size = 0x8000, scoped, tag = 'input window, operand 6, single buffered']
    #allocation14 [shape = 'u8[4096]{0}', space=vmem, size = 0x1000, scoped, tag = 'output window, operand 0, single buffered']
    #allocation15 [shape = 'u8[4096]{0}', space=vmem, size = 0x1000, scoped, tag = 'output window, operand 1, single buffered']
    #allocation16 [shape = 's32[1]{0}', space=sflag, size = 0x4, scoped, tag = 'scoped memory for tpu_custom_call.1']
    %14 = vsyncpa [#allocation6], 0
    %15 = vsyncpa [#allocation9], 0
    %16 = vsyncpa [#allocation12], 0
    %17 = vsyncpa [#allocation7], 0
    %18 = vsyncpa [#allocation16], 0
    // Predicated region
    $region2: #{tpu_custom_call.1} parent=1 // pred_check
      _
    $region3: #{tpu_custom_call.1} parent=1 // pred_check_branch
      %20 = sbr.rel (0) target = $region5
    $region4: #{tpu_custom_call.1} parent=1 // pred_region
      %s22 = ssub.s32 128, 128
      %23 = vsyncadd [#allocation6], %s22
      %s25 = sshll.u32 [#allocation5], 4
      %s26 = int_to_ptr.vmem [resolvable:$true] %s25
      %28 = dma.hbm_to_vmem [thread:$0]  %s0, 128, %s26, [#allocation6]
    $region5: #{tpu_custom_call.1} parent=1 // pred_fallthru
      _
    // Predicated region
    $region6: #{tpu_custom_call.1} parent=1 // pred_check
      _
    $region7: #{tpu_custom_call.1} parent=1 // pred_check_branch
      %30 = sbr.rel (0) target = $region9
    $region8: #{tpu_custom_call.1} parent=1 // pred_region
      %s32 = ssub.s32 128, 128
      %33 = vsyncadd [#allocation9], %s32
      %s35 = sshll.u32 [#allocation8], 4
      %s36 = int_to_ptr.vmem [resolvable:$true] %s35
      %38 = dma.hbm_to_vmem [thread:$0]  %s1, 128, %s36, [#allocation9]
    $region9: #{tpu_custom_call.1} parent=1 // pred_fallthru
      _
    // Predicated region
    $region10: #{tpu_custom_call.1} parent=1 // pred_check
      _
    $region11: #{tpu_custom_call.1} parent=1 // pred_check_branch
      %40 = sbr.rel (0) target = $region13
    $region12: #{tpu_custom_call.1} parent=1 // pred_region
      %s42 = ssub.s32 128, 128
      %43 = vsyncadd [#allocation9], %s42
      %s45 = sshll.u32 [#allocation10], 4
      %s46 = int_to_ptr.vmem [resolvable:$true] %s45
      %48 = dma.hbm_to_vmem [thread:$0]  %s2, 128, %s46, [#allocation9]
    $region13: #{tpu_custom_call.1} parent=1 // pred_fallthru
      _
    // Predicated region
    $region14: #{tpu_custom_call.1} parent=1 // pred_check
      _
    $region15: #{tpu_custom_call.1} parent=1 // pred_check_branch
      %50 = sbr.rel (0) target = $region17
    $region16: #{tpu_custom_call.1} parent=1 // pred_region
      _
    $region17: #{tpu_custom_call.1} parent=1 // pred_fallthru
      _
    // Predicated region
    $region18: #{tpu_custom_call.1} parent=1 // pred_check
      _
    $region19: #{tpu_custom_call.1} parent=1 // pred_check_branch
      %52 = sbr.rel (0) target = $region21
    $region20: #{tpu_custom_call.1} parent=1 // pred_region
      %s54 = ssub.s32 512, 512
      %55 = vsyncadd [#allocation12], %s54
      %s56 = sshll.u32 [#allocation11], 4
      %s57 = int_to_ptr.vmem [resolvable:$true] %s56
      %62 = dma.hbm_to_vmem [thread:$0]  %s4, 512, %s57, [#allocation12], 128, 128, 8
    $region21: #{tpu_custom_call.1} parent=1 // pred_fallthru
      _
    // Predicated region
    $region22: #{tpu_custom_call.1} parent=1 // pred_check
      _
    $region23: #{tpu_custom_call.1} parent=1 // pred_check_branch
      %64 = sbr.rel (0) target = $region25
    $region24: #{tpu_custom_call.1} parent=1 // pred_region
      _
    $region25: #{tpu_custom_call.1} parent=1 // pred_fallthru
      _
    // Predicated region
    $region26: #{tpu_custom_call.1} parent=1 // pred_check
      _
    $region27: #{tpu_custom_call.1} parent=1 // pred_check_branch
      %66 = sbr.rel (0) target = $region29
    $region28: #{tpu_custom_call.1} parent=1 // pred_region
      %s68 = ssub.s32 1024, 1024
      %69 = vsyncadd [#allocation12], %s68
      %s70 = sshll.u32 [#allocation13], 4
      %s71 = int_to_ptr.vmem [resolvable:$true] %s70
      %76 = dma.hbm_to_vmem [thread:$0]  %s6, 1024, %s71, [#allocation12], 64, 64, 4
    $region29: #{tpu_custom_call.1} parent=1 // pred_fallthru
      _
    // Predicated region
    $region30: #{tpu_custom_call.1} parent=1 // pred_check
      _
    $region31: #{tpu_custom_call.1} parent=1 // pred_check_branch
      %78 = sbr.rel (0) target = $region33
    $region32: #{tpu_custom_call.1} parent=1 // pred_region
      %79 = dma.done [#allocation6], 128
    $region33: #{tpu_custom_call.1} parent=1 // pred_fallthru
      _
    // Predicated region
    $region34: #{tpu_custom_call.1} parent=1 // pred_check
      _
    $region35: #{tpu_custom_call.1} parent=1 // pred_check_branch
      %81 = sbr.rel (0) target = $region37
    $region36: #{tpu_custom_call.1} parent=1 // pred_region
      %82 = dma.done [#allocation9], 128
    $region37: #{tpu_custom_call.1} parent=1 // pred_fallthru
      _
    // Predicated region
    $region38: #{tpu_custom_call.1} parent=1 // pred_check
      _
    $region39: #{tpu_custom_call.1} parent=1 // pred_check_branch
      %84 = sbr.rel (0) target = $region41
    $region40: #{tpu_custom_call.1} parent=1 // pred_region
      %85 = dma.done [#allocation9], 128
    $region41: #{tpu_custom_call.1} parent=1 // pred_fallthru
      _
    // Predicated region
    $region42: #{tpu_custom_call.1} parent=1 // pred_check
      _
    $region43: #{tpu_custom_call.1} parent=1 // pred_check_branch
      %87 = sbr.rel (0) target = $region45
    $region44: #{tpu_custom_call.1} parent=1 // pred_region
      %88 = dma.done [#allocation12], 512
    $region45: #{tpu_custom_call.1} parent=1 // pred_fallthru
      _
    // Predicated region
    $region46: #{tpu_custom_call.1} parent=1 // pred_check
      _
    $region47: #{tpu_custom_call.1} parent=1 // pred_check_branch
      %90 = sbr.rel (0) target = $region49
    $region48: #{tpu_custom_call.1} parent=1 // pred_region
      %91 = dma.done [#allocation12], 1024
    $region49: #{tpu_custom_call.1} parent=1 // pred_fallthru
      _
    %p93 = scmp.eq.s32.totalorder 0, 0
    // Predicated region
    $region50: #{tpu_custom_call.1} parent=1 // pred_check
      %p94 = pneg %p93
    $region51: #{tpu_custom_call.1} parent=1 // pred_check_branch
      %96 = sbr.rel (%p94) target = $region53
    $region52: #{tpu_custom_call.1} parent=1 // pred_region
      %v97 = vld [vmem:[#allocation10] sm:$0xff]
      %vm98 = vcmask 261120
      %99 = vst.msk [vmem:[#allocation2] sm:$0xff] %vm98, %v97
      %v100 = vld [vmem:[%s3] sm:$0xff]
      %101 = vst.msk [vmem:[#allocation3] sm:$0xff] %vm98, %v100
      %102 = vst [vmem:[#allocation4] sm:$0xff] 0.0
    $region53: #{tpu_custom_call.1} parent=1 // pred_fallthru
      _
    %v103 = vld [vmem:[#allocation5] sm:$0xff]
    %v104 = vpack.c.bf16 %v103, %v103
    %v105 = vld [vmem:[#allocation8] sm:$0xff]
    %v106 = vld [vmem:[#allocation11] sm:$0xff]
    %v107 = vld [vmem:[#allocation11 + $0x8] sm:$0xff]
    %v108 = vld [vmem:[#allocation11 + $0x10] sm:$0xff]
    %v109 = vld [vmem:[#allocation11 + $0x18] sm:$0xff]
    %v110 = vld [vmem:[%s5] sm:$0x3]
    %v112 = vlaneseq
    %v113 = vshrl.u32 %v112, 7
    %v114 = vsub.s32 0, %v113
    %v115 = vrot.slane %v110, %v114
    %v116 = vlaneseq
    %v117 = vshrl.u32 %v116, 7
    %v118 = vsub.s32 1, %v117
    %v119 = vrot.slane %v110, %v118
    %v126 = vunpack.c.l.b16 %v106
    %v127 = vunpack.c.h.b16 %v106
    %v128 = vunpack.c.l.b16 %v107
    %v129 = vunpack.c.h.b16 %v107
    %v130 = vunpack.c.l.b16 %v108
    %v131 = vunpack.c.h.b16 %v108
    %v132 = vunpack.c.l.b16 %v109
    %v133 = vunpack.c.h.b16 %v109
    %v134 = vpack.c.b16 %v128, %v126
    %v135 = vpack.c.b16 %v129, %v127
    %v136 = vpack.c.b16 %v132, %v130
    %v137 = vpack.c.b16 %v133, %v131
    %vm142 = vcmask 261120
    %v144 = vsel %vm142, %v104, 0
    %146 = vmatprep.subr.bf16.mxu0 %v135
    %147 = vmatpush1.bf16.msra.mxu0 %v134
    %148 = vmatprep.subr.bf16.mxu0 %v137
    %149 = vmatpush1.bf16.msra.mxu0 %v136
    %150 = vmatprep.subr.bf16.mxu0 0
    %151 = vmatpush1.bf16.msra.mxu0 0
    %152 = vmatprep.subr.bf16.mxu0 0
    %153 = vmatpush1.bf16.msra.mxu0 0
    %154 = vmatprep.subr.bf16.mxu0 0
    %155 = vmatpush1.bf16.msra.mxu0 0
    %156 = vmatprep.subr.bf16.mxu0 0
    %157 = vmatpush1.bf16.msra.mxu0 0
    %158 = vmatprep.subr.bf16.mxu0 0
    %159 = vmatpush1.bf16.msra.mxu0 0
    %160 = vmatprep.subr.bf16.mxu0 0
    %161 = vmatpush1.bf16.msra.mxu0 0
    %162 = vmatprep.subr.bf16.mxu0 0
    %163 = vmatpush1.bf16.msra.mxu0 0
    %164 = vmatprep.subr.bf16.mxu0 0
    %165 = vmatpush1.bf16.msra.mxu0 0
    %166 = vmatprep.subr.bf16.mxu0 0
    %167 = vmatpush1.bf16.msra.mxu0 0
    %168 = vmatprep.subr.bf16.mxu0 0
    %169 = vmatpush1.bf16.msra.mxu0 0
    %170 = vmatprep.subr.bf16.mxu0 0
    %171 = vmatpush1.bf16.msra.mxu0 0
    %172 = vmatprep.subr.bf16.mxu0 0
    %173 = vmatpush1.bf16.msra.mxu0 0
    %174 = vmatprep.subr.bf16.mxu0 0
    %175 = vmatpush1.bf16.msra.mxu0 0
    %176 = vmatprep.subr.bf16.mxu0 0
    %177 = vmatpush1.bf16.msra.mxu0 0
    %178 = vmatprep.mubr.bf16.mxu0 0
    %179 = vmatmul.mubr.bf16.gmra.mrb[0].mxu0 %v144
    %v180 = vpop.f32.mrb[0].mxu0
    %v181 = vadd.f32 %v115, %v180
    %v182 = vpop.f32.mrb[0].mxu0
    %v183 = vadd.f32 %v119, %v182
    %v184 = vpop.f32.mrb[0].mxu0
    %v185 = vpop.f32.mrb[0].mxu0
    %186 = vdwg.mxu0
    %v187 = vld [vmem:[#allocation2] sm:$0xff]
    %188 = vst.msk [vmem:[#allocation4] sm:$0xff] %vm142, %v187
    %190 = vrot.lane.b32.xlu0 %v105, 32
    %v191 = vpop.permute.xlu0 %190
    %vm193 = vcmask 392448
    %194 = vst.msk [vmem:[#allocation4] sm:$0xff] %vm193, %v191
    %v195 = vxor.u32 %v181, 2147483648
    %v196 = vmul.f32 %v195, 1.442695
    %v197 = vpow.pop %v196
    %v198 = vadd.f32 %v197, 1.0
    %v199 = vrcp.pop %v198
    %v200 = vmul.f32 1.0, %v199
    %v201 = vld [vmem:[#allocation4] sm:$0xff]
    %v202 = vmul.f32 %v200, %v201
    %v203 = vpack.c.bf16 %v202, %v202
    %v204 = vld [vmem:[#allocation13] sm:$0xf]
    %v205 = vld [vmem:[#allocation13 + $0x4] sm:$0xf]
    %v206 = vld [vmem:[#allocation13 + $0x8] sm:$0xf]
    %v207 = vld [vmem:[#allocation13 + $0xc] sm:$0xf]
    %v208 = vld [vmem:[#allocation13 + $0x10] sm:$0xf]
    %v209 = vld [vmem:[#allocation13 + $0x14] sm:$0xf]
    %v210 = vld [vmem:[#allocation13 + $0x18] sm:$0xf]
    %v211 = vld [vmem:[#allocation13 + $0x1c] sm:$0xf]
    %v212 = vld [vmem:[#allocation13 + $0x20] sm:$0xf]
    %v213 = vld [vmem:[#allocation13 + $0x24] sm:$0xf]
    %v214 = vld [vmem:[#allocation13 + $0x28] sm:$0xf]
    %v215 = vld [vmem:[#allocation13 + $0x2c] sm:$0xf]
    %v216 = vld [vmem:[#allocation13 + $0x30] sm:$0xf]
    %v217 = vld [vmem:[#allocation13 + $0x34] sm:$0xf]
    %v218 = vld [vmem:[#allocation13 + $0x38] sm:$0xf]
    %v219 = vld [vmem:[#allocation13 + $0x3c] sm:$0xf]
    %v236 = vunpack.c.l.b16 %v204
    %v237 = vunpack.c.l.b16 %v205
    %v238 = vunpack.c.l.b16 %v206
    %v239 = vunpack.c.l.b16 %v207
    %v240 = vunpack.c.l.b16 %v208
    %v241 = vunpack.c.l.b16 %v209
    %v242 = vunpack.c.l.b16 %v210
    %v243 = vunpack.c.l.b16 %v211
    %v244 = vunpack.c.l.b16 %v212
    %v245 = vunpack.c.l.b16 %v213
    %v246 = vunpack.c.l.b16 %v214
    %v247 = vunpack.c.l.b16 %v215
    %v248 = vunpack.c.l.b16 %v216
    %v249 = vunpack.c.l.b16 %v217
    %v250 = vunpack.c.l.b16 %v218
    %v251 = vunpack.c.l.b16 %v219
    %v252 = vpack.c.b16 %v237, %v236
    %v253 = vpack.c.b16 %v239, %v238
    %v254 = vpack.c.b16 %v241, %v240
    %v255 = vpack.c.b16 %v243, %v242
    %v256 = vpack.c.b16 %v245, %v244
    %v257 = vpack.c.b16 %v247, %v246
    %v258 = vpack.c.b16 %v249, %v248
    %v259 = vpack.c.b16 %v251, %v250
    %268 = vmatprep.subr.bf16.mxu0 0
    %269 = vmatpush1.bf16.msra.mxu0 %v252
    %270 = vmatprep.subr.bf16.mxu0 0
    %271 = vmatpush1.bf16.msra.mxu0 %v253
    %272 = vmatprep.subr.bf16.mxu0 0
    %273 = vmatpush1.bf16.msra.mxu0 %v254
    %274 = vmatprep.subr.bf16.mxu0 0
    %275 = vmatpush1.bf16.msra.mxu0 %v255
    %276 = vmatprep.subr.bf16.mxu0 0
    %277 = vmatpush1.bf16.msra.mxu0 %v256
    %278 = vmatprep.subr.bf16.mxu0 0
    %279 = vmatpush1.bf16.msra.mxu0 %v257
    %280 = vmatprep.subr.bf16.mxu0 0
    %281 = vmatpush1.bf16.msra.mxu0 %v258
    %282 = vmatprep.subr.bf16.mxu0 0
    %283 = vmatpush1.bf16.msra.mxu0 %v259
    %284 = vmatprep.subr.bf16.mxu0 0
    %285 = vmatpush1.bf16.msra.mxu0 0
    %286 = vmatprep.subr.bf16.mxu0 0
    %287 = vmatpush1.bf16.msra.mxu0 0
    %288 = vmatprep.subr.bf16.mxu0 0
    %289 = vmatpush1.bf16.msra.mxu0 0
    %290 = vmatprep.subr.bf16.mxu0 0
    %291 = vmatpush1.bf16.msra.mxu0 0
    %292 = vmatprep.subr.bf16.mxu0 0
    %293 = vmatpush1.bf16.msra.mxu0 0
    %294 = vmatprep.subr.bf16.mxu0 0
    %295 = vmatpush1.bf16.msra.mxu0 0
    %296 = vmatprep.subr.bf16.mxu0 0
    %297 = vmatpush1.bf16.msra.mxu0 0
    %298 = vmatprep.subr.bf16.mxu0 0
    %299 = vmatpush1.bf16.msra.mxu0 0
    %300 = vmatprep.mubr.bf16.mxu0 0
    %301 = vmatmul.mubr.bf16.gmra.mrb[0].mxu0 %v203
    %v302 = vpop.f32.mrb[0].mxu0
    %v303 = vadd.f32 0.0, %v302
    %v304 = vpop.f32.mrb[0].mxu0
    %v305 = vpop.f32.mrb[0].mxu0
    %v306 = vpop.f32.mrb[0].mxu0
    %307 = vdwg.mxu0
    %v308 = vadd.f32 %v183, %v303
    %v309 = vxor.u32 %v308, 2147483648
    %v310 = vmul.f32 %v309, 1.442695
    %v311 = vpow.pop %v310
    %v312 = vadd.f32 %v311, 1.0
    %v313 = vrcp.pop %v312
    %v314 = vmul.f32 1.0, %v313
    %v315 = vtanh.pop %v308
    %v316 = vld [vmem:[#allocation3] sm:$0xff]
    %v317 = vmul.f32 %v316, %v314
    %319 = vrot.lane.b32.xlu0 %v315, 64
    %v320 = vpop.permute.xlu0 %319
    %v322 = vmul.f32 %v314, %v320
    %324 = vrot.lane.b32.xlu0 %v322, 96
    %v325 = vpop.permute.xlu0 %324
    %v327 = vadd.f32 %v317, %v325
    %v328 = vtanh.pop %v327
    %330 = vrot.lane.b32.xlu0 %v328, 64
    %v331 = vpop.permute.xlu0 %330
    %v333 = vmul.f32 %v314, %v331
    %335 = vrot.lane.b32.xlu0 %v333, 64
    %v336 = vpop.permute.xlu0 %335
    %338 = vst.msk [vmem:[#allocation2] sm:$0xff] %vm142, %v336
    %339 = vst.msk [vmem:[#allocation3] sm:$0xff] %vm142, %v327
    %340 = vst.msk [vmem:[#allocation14] sm:$0xff] %vm142, %v336
    %341 = vst.msk [vmem:[#allocation15] sm:$0xff] %vm142, %v327
    // Predicated region
    $region54: #{tpu_custom_call.1} parent=1 // pred_check
      _
    $region55: #{tpu_custom_call.1} parent=1 // pred_check_branch
      %343 = sbr.rel (0) target = $region57
    $region56: #{tpu_custom_call.1} parent=1 // pred_region
      %s345 = ssub.s32 128, 128
      %346 = vsyncadd [#allocation7], %s345
      %s348 = sshll.u32 [#allocation14], 4
      %s349 = int_to_ptr.vmem [resolvable:$true] %s348
      %351 = dma.vmem_to_hbm [thread:$0]  %s349, 128, %s7, [#allocation7]
    $region57: #{tpu_custom_call.1} parent=1 // pred_fallthru
      _
    // Predicated region
    $region58: #{tpu_custom_call.1} parent=1 // pred_check
      _
    $region59: #{tpu_custom_call.1} parent=1 // pred_check_branch
      %353 = sbr.rel (0) target = $region61
    $region60: #{tpu_custom_call.1} parent=1 // pred_region
      %s355 = ssub.s32 128, 128
      %356 = vsyncadd [#allocation16], %s355
      %s358 = sshll.u32 [#allocation15], 4
      %s359 = int_to_ptr.vmem [resolvable:$true] %s358
      %361 = dma.vmem_to_hbm [thread:$0]  %s359, 128, %s8, [#allocation16]
    $region61: #{tpu_custom_call.1} parent=1 // pred_fallthru
      _
    // Predicated region
    $region62: #{tpu_custom_call.1} parent=1 // pred_check
      _
    $region63: #{tpu_custom_call.1} parent=1 // pred_check_branch
      %363 = sbr.rel (0) target = $region65
    $region64: #{tpu_custom_call.1} parent=1 // pred_region
      %364 = dma.done [#allocation7], 128
    $region65: #{tpu_custom_call.1} parent=1 // pred_fallthru
      _
    // Predicated region
    $region66: #{tpu_custom_call.1} parent=1 // pred_check
      _
    $region67: #{tpu_custom_call.1} parent=1 // pred_check_branch
      %366 = sbr.rel (0) target = $region69
    $region68: #{tpu_custom_call.1} parent=1 // pred_region
      %367 = dma.done [#allocation16], 128
    $region69: #{tpu_custom_call.1} parent=1 // pred_fallthru
      _
    %368 = vsyncpa [#allocation6], 1
    %369 = vsyncpa [#allocation9], 1
    %370 = vsyncpa [#allocation12], 1
    %371 = vsyncpa [#allocation7], 1
    %372 = vsyncpa [#allocation16], 1

</llo_original>
